<compile_context>
chip_gen: v7x
topology: tpu7x:2x2x1
jax: 0.10.0
libtpu: 0.0.40
codegen_flags: <defaults>
</compile_context>

<pallas_src>
import jax
import jax.numpy as jnp
from jax.experimental import pallas as pl
from jax.experimental.pallas import tpu as pltpu


def _round_up(x: int, m: int) -> int:
    return (x + m - 1) // m * m


def make_resnet_kernel(n_layers: int, theta: float):
    """Fused forward: L2-normalize + (depth-1) bias-free Linear+ReLU layers
    with theta-scaled residuals on the middle layers.  Writes the lane-dense
    last hidden activation; the +/-1 projection happens in the wrapper."""
    last = n_layers - 1

    def kernel(x_ref, *rest):
        w_refs = rest[:n_layers]      # padded, pre-transposed [in_p, out_p] (bf16)
        o_ref = rest[n_layers]        # [TILE_N, out_p] f32

        x = x_ref[...]                # f32 [TILE_N, in_p]

        # torch.nn.functional.normalize(x, p=2, dim=1), done with rsqrt so the
        # divide moves to the (otherwise idle) EUP.  Padded all-zero rows stay 0.
        sumsq = jnp.sum(x * x, axis=1, keepdims=True)
        out = x * jax.lax.rsqrt(jnp.maximum(sumsq, 1e-24))

        # depth is a trace-time constant -> small unrolled layer stack.
        # (For very deep nets, stack the identical middle layers into one
        #  [L, inter, inter] array and fori_loop / stream them instead.)
        for i in range(n_layers):
            w = w_refs[i][...]
            pre = jnp.dot(out.astype(w.dtype), w,
                          preferred_element_type=jnp.float32)   # MXU, f32 acc
            act = jnp.maximum(pre, 0.0)
            if i == 0 or i == last:
                out = act
            else:
                out = act + theta * out    # residual kept in f32

        o_ref[...] = out                   # lane-dense store

    return kernel


def resnet_forward(x, weights, v, theta, *,
                   tile_n: int = 512, weight_dtype=jnp.bfloat16):
    """weights: list of torch-layout nn.Linear weights [out_f, in_f] (no bias).
    v: +/-1 projection vector of length output_dim."""
    n_layers = len(weights)
    input_dim = weights[0].shape[1]
    output_dim = weights[-1].shape[0]

    # ---- pad feature dims to lane multiples of 128 (zero padding is exact) ----
    in_p = _round_up(input_dim, 128)
    out_dims_p = [_round_up(w.shape[0], 128) for w in weights]
    in_dims_p = [in_p] + out_dims_p[:-1]
    out_p = out_dims_p[-1]

    w_padded = []
    for w, ip, op in zip(weights, in_dims_p, out_dims_p):
        wt = jnp.asarray(w, jnp.float32).T                     # [in_f, out_f]
        wt = jnp.pad(wt, ((0, ip - wt.shape[0]), (0, op - wt.shape[1])))
        w_padded.append(wt.astype(weight_dtype))               # bf16 for the MXU

    # ---- reshape/pad input; tile the batch (sublane) dimension ----
    x2 = jnp.asarray(x, jnp.float32).reshape(-1, input_dim)
    n = x2.shape[0]
    tn = min(tile_n, _round_up(n, 8))                          # f32 sublane multiple
    n_pad = _round_up(n, tn)
    x2 = jnp.pad(x2, ((0, n_pad - n), (0, in_p - input_dim)))

    grid = (n_pad // tn,)
    kernel = make_resnet_kernel(n_layers, float(theta))

    # VMEM budget: double-buffered x/out tiles + resident weights (with margin).
    est = 2 * 2 * (tn * in_p + tn * out_p) * 4 \
        + 2 * sum(int(w.size) * w.dtype.itemsize for w in w_padded)
    vmem_limit = int(min(64 * 1024 * 1024, max(32 * 1024 * 1024, 2 * est)))

    in_specs = [pl.BlockSpec((tn, in_p), lambda i: (i, 0))]     # streamed x tiles
    for ip, op in zip(in_dims_p, out_dims_p):
        in_specs.append(pl.BlockSpec((ip, op), lambda i: (0, 0)))  # resident weights

    hidden = pl.pallas_call(
        kernel,
        out_shape=jax.ShapeDtypeStruct((n_pad, out_p), jnp.float32),
        grid=grid,
        in_specs=in_specs,
        out_specs=pl.BlockSpec((tn, out_p), lambda i: (i, 0)),
        compiler_params=pltpu.CompilerParams(
            dimension_semantics=("parallel",),
            vmem_limit_bytes=vmem_limit),
    )(x2, *w_padded)

    # Trivial +/-1 projection on the lane-dense kernel output (padded rows/cols
    # are exactly zero and are sliced off here).
    v = jnp.asarray(v, jnp.float32)
    return hidden[:n, :output_dim] @ v


def init_resnet_params(key, input_dim, inter_dim, output_dim, depth):
    """Deterministic weight init matching the PyTorch module's __init__
    (torch layout: weight[i] has shape [out_features, in_features])."""
    assert output_dim % 2 == 0
    weights = []
    for i in range(depth - 1):
        if i == 0:
            out_f, in_f = inter_dim, input_dim
        elif i == depth - 2:
            out_f, in_f = output_dim, inter_dim
        else:
            out_f, in_f = inter_dim, inter_dim
        key, sub = jax.random.split(key)
        w = jax.random.normal(sub, (out_f, in_f), jnp.float32) \
            * jnp.sqrt(2.0 / out_f)
        weights.append(w)
    v = jnp.concatenate([jnp.ones((output_dim // 2,), jnp.float32),
                         -jnp.ones((output_dim // 2,), jnp.float32)])
    return weights, v


def resnet_reference_f32(x, weights, v, theta):
    """Exact torch-semantics forward (f32 weights, sqrt/divide normalize)."""
    input_dim = weights[0].shape[1]
    depth = len(weights) + 1
    x2 = jnp.asarray(x, jnp.float32).reshape(-1, input_dim)
    norm = jnp.sqrt(jnp.sum(x2 * x2, axis=1, keepdims=True))
    out = x2 / jnp.maximum(norm, 1e-12)
    for i, w in enumerate(weights):
        act = jnp.maximum(out @ w.T, 0.0)
        out = act if (i == 0 or i == depth - 2) else act + theta * out
    return out @ v


def resnet_reference_mirror(x, weights, v, theta, weight_dtype=jnp.bfloat16):
    """Pure-JAX reference mirroring the kernel numerics (rsqrt + bf16 matmuls
    with f32 accumulation) for a tight correctness check."""
    input_dim = weights[0].shape[1]
    depth = len(weights) + 1
    x2 = jnp.asarray(x, jnp.float32).reshape(-1, input_dim)
    sumsq = jnp.sum(x2 * x2, axis=1, keepdims=True)
    out = x2 * jax.lax.rsqrt(jnp.maximum(sumsq, 1e-24))
    for i, w in enumerate(weights):
        wt = jnp.asarray(w, jnp.float32).T.astype(weight_dtype)
        pre = jnp.dot(out.astype(weight_dtype), wt,
                      preferred_element_type=jnp.float32)
        act = jnp.maximum(pre, 0.0)
        out = act if (i == 0 or i == depth - 2) else act + theta * out
    return out @ v


if __name__ == "__main__":
    # Small shapes consistent with the module's forward (reshaped to (8, 16)).
    input_dim, inter_dim, output_dim = 16, 32, 8
    depth, theta = 5, 0.5   # layers: 0 (in->inter), 1,2 (residual), 3 (inter->out)

    key = jax.random.PRNGKey(0)
    key, kx = jax.random.split(key)
    x = jax.random.normal(kx, (2, 4, input_dim), dtype=jnp.float32)

    weights, v = init_resnet_params(key, input_dim, inter_dim, output_dim, depth)

    out = resnet_forward(x, weights, v, theta)
    out = jax.block_until_ready(out)
    assert out.shape == (8,), out.shape

    # Tight check vs a reference with identical numerics (bf16 MXU, f32 acc).
    ref_mirror = resnet_reference_mirror(x, weights, v, theta)
    assert jnp.allclose(out, ref_mirror, atol=1e-3, rtol=1e-3), (out, ref_mirror)

    # Looser sanity check vs the exact f32 torch-semantics forward
    # (difference comes only from bf16 weight/activation rounding).
    ref_f32 = resnet_reference_f32(x, weights, v, theta)
    assert jnp.allclose(out, ref_f32, atol=1e-1, rtol=1e-1), (out, ref_f32)

    print("KERNEL_OK")
</pallas_src>

<mosaic_0001>
module attributes {stable_mosaic.version = 11 : i64} {
  func.func @kernel(%arg0: i32, %arg1: memref<8x128xf32, #tpu.memory_space<vmem>>, %arg2: memref<128x128xbf16, #tpu.memory_space<vmem>>, %arg3: memref<128x128xbf16, #tpu.memory_space<vmem>>, %arg4: memref<128x128xbf16, #tpu.memory_space<vmem>>, %arg5: memref<128x128xbf16, #tpu.memory_space<vmem>>, %arg6: memref<8x128xf32, #tpu.memory_space<vmem>>) attributes {dimension_semantics = [#tpu.dimension_semantics<parallel>], iteration_bounds = array<i64: 1>, scalar_prefetch = 0 : i64, scratch_operands = 0 : i64, tpu.core_type = #tpu.core_type<tc>, window_params = [{transform_indices = @transform_0, window_bounds = array<i64: 8, 128>}, {pipeline_mode = #tpu.pipeline_mode<synchronous>, transform_indices = @transform_1, window_bounds = array<i64: 128, 128>}, {pipeline_mode = #tpu.pipeline_mode<synchronous>, transform_indices = @transform_2, window_bounds = array<i64: 128, 128>}, {pipeline_mode = #tpu.pipeline_mode<synchronous>, transform_indices = @transform_3, window_bounds = array<i64: 128, 128>}, {pipeline_mode = #tpu.pipeline_mode<synchronous>, transform_indices = @transform_4, window_bounds = array<i64: 128, 128>}, {transform_indices = @transform_5, window_bounds = array<i64: 8, 128>}]} {
    %c0 = arith.constant 0 : index
    %c0_0 = arith.constant 0 : index
    %0 = vector.load %arg1[%c0, %c0_0] : memref<8x128xf32, #tpu.memory_space<vmem>>, vector<8x128xf32>
    %1 = arith.mulf %0, %0 : vector<8x128xf32>
    %cst = arith.constant dense<0.000000e+00> : vector<8xf32>
    %2 = vector.multi_reduction <add>, %1, %cst [1] : vector<8x128xf32> to vector<8xf32>
    %3 = vector.shape_cast %2 : vector<8xf32> to vector<8x1xf32>
    %cst_1 = arith.constant 1.000000e-24 : f32
    %4 = vector.broadcast %cst_1 : f32 to vector<8x1xf32>
    %5 = arith.maximumf %3, %4 : vector<8x1xf32>
    %6 = math.rsqrt %5 : vector<8x1xf32>
    %7 = vector.broadcast %6 : vector<8x1xf32> to vector<8x128xf32>
    %8 = arith.mulf %0, %7 : vector<8x128xf32>
    %c0_2 = arith.constant 0 : index
    %c0_3 = arith.constant 0 : index
    %9 = vector.load %arg2[%c0_2, %c0_3] : memref<128x128xbf16, #tpu.memory_space<vmem>>, vector<128x128xbf16>
    %10 = arith.truncf %8 : vector<8x128xf32> to vector<8x128xbf16>
    %cst_4 = arith.constant dense<0.000000e+00> : vector<8x128xf32>
    %11 = tpu.matmul %10, %9, %cst_4 {dimension_numbers = #tpu.dot_dimension_numbers<[1], [0], [0], [1], [0, 0, 1, 1], [], []>} : vector<8x128xbf16>, vector<128x128xbf16>, vector<8x128xf32> -> vector<8x128xf32>
    %cst_5 = arith.constant 0.000000e+00 : f32
    %12 = vector.broadcast %cst_5 : f32 to vector<8x128xf32>
    %13 = arith.maximumf %11, %12 : vector<8x128xf32>
    %c0_6 = arith.constant 0 : index
    %c0_7 = arith.constant 0 : index
    %14 = vector.load %arg3[%c0_6, %c0_7] : memref<128x128xbf16, #tpu.memory_space<vmem>>, vector<128x128xbf16>
    %15 = arith.truncf %13 : vector<8x128xf32> to vector<8x128xbf16>
    %cst_8 = arith.constant dense<0.000000e+00> : vector<8x128xf32>
    %16 = tpu.matmul %15, %14, %cst_8 {dimension_numbers = #tpu.dot_dimension_numbers<[1], [0], [0], [1], [0, 0, 1, 1], [], []>} : vector<8x128xbf16>, vector<128x128xbf16>, vector<8x128xf32> -> vector<8x128xf32>
    %cst_9 = arith.constant 0.000000e+00 : f32
    %17 = vector.broadcast %cst_9 : f32 to vector<8x128xf32>
    %18 = arith.maximumf %16, %17 : vector<8x128xf32>
    %cst_10 = arith.constant 5.000000e-01 : f32
    %19 = vector.broadcast %cst_10 : f32 to vector<8x128xf32>
    %20 = arith.mulf %19, %13 : vector<8x128xf32>
    %21 = arith.addf %18, %20 : vector<8x128xf32>
    %c0_11 = arith.constant 0 : index
    %c0_12 = arith.constant 0 : index
    %22 = vector.load %arg4[%c0_11, %c0_12] : memref<128x128xbf16, #tpu.memory_space<vmem>>, vector<128x128xbf16>
    %23 = arith.truncf %21 : vector<8x128xf32> to vector<8x128xbf16>
    %cst_13 = arith.constant dense<0.000000e+00> : vector<8x128xf32>
    %24 = tpu.matmul %23, %22, %cst_13 {dimension_numbers = #tpu.dot_dimension_numbers<[1], [0], [0], [1], [0, 0, 1, 1], [], []>} : vector<8x128xbf16>, vector<128x128xbf16>, vector<8x128xf32> -> vector<8x128xf32>
    %cst_14 = arith.constant 0.000000e+00 : f32
    %25 = vector.broadcast %cst_14 : f32 to vector<8x128xf32>
    %26 = arith.maximumf %24, %25 : vector<8x128xf32>
    %cst_15 = arith.constant 5.000000e-01 : f32
    %27 = vector.broadcast %cst_15 : f32 to vector<8x128xf32>
    %28 = arith.mulf %27, %21 : vector<8x128xf32>
    %29 = arith.addf %26, %28 : vector<8x128xf32>
    %c0_16 = arith.constant 0 : index
    %c0_17 = arith.constant 0 : index
    %30 = vector.load %arg5[%c0_16, %c0_17] : memref<128x128xbf16, #tpu.memory_space<vmem>>, vector<128x128xbf16>
    %31 = arith.truncf %29 : vector<8x128xf32> to vector<8x128xbf16>
    %cst_18 = arith.constant dense<0.000000e+00> : vector<8x128xf32>
    %32 = tpu.matmul %31, %30, %cst_18 {dimension_numbers = #tpu.dot_dimension_numbers<[1], [0], [0], [1], [0, 0, 1, 1], [], []>} : vector<8x128xbf16>, vector<128x128xbf16>, vector<8x128xf32> -> vector<8x128xf32>
    %cst_19 = arith.constant 0.000000e+00 : f32
    %33 = vector.broadcast %cst_19 : f32 to vector<8x128xf32>
    %34 = arith.maximumf %32, %33 : vector<8x128xf32>
    %c0_20 = arith.constant 0 : index
    %c0_21 = arith.constant 0 : index
    %35 = vector.load %arg6[%c0_20, %c0_21] : memref<8x128xf32, #tpu.memory_space<vmem>>, vector<8x128xf32>
    tpu.vector_store %arg6[%c0_20, %c0_21], %34 {strides = array<i32>} : memref<8x128xf32, #tpu.memory_space<vmem>>, vector<8x128xf32>,
    return
  }
  func.func @transform_0(%arg0: i32) -> (i32, i32) {
    %c0_i32 = arith.constant 0 : i32
    %c0_i32_0 = arith.constant 0 : i32
    return %arg0, %c0_i32 : i32, i32
  }
  func.func @transform_1(%arg0: i32) -> (i32, i32) {
    %c0_i32 = arith.constant 0 : i32
    %c0_i32_0 = arith.constant 0 : i32
    %c0_i32_1 = arith.constant 0 : i32
    return %c0_i32, %c0_i32_0 : i32, i32
  }
  func.func @transform_2(%arg0: i32) -> (i32, i32) {
    %c0_i32 = arith.constant 0 : i32
    %c0_i32_0 = arith.constant 0 : i32
    %c0_i32_1 = arith.constant 0 : i32
    return %c0_i32, %c0_i32_0 : i32, i32
  }
  func.func @transform_3(%arg0: i32) -> (i32, i32) {
    %c0_i32 = arith.constant 0 : i32
    %c0_i32_0 = arith.constant 0 : i32
    %c0_i32_1 = arith.constant 0 : i32
    return %c0_i32, %c0_i32_0 : i32, i32
  }
  func.func @transform_4(%arg0: i32) -> (i32, i32) {
    %c0_i32 = arith.constant 0 : i32
    %c0_i32_0 = arith.constant 0 : i32
    %c0_i32_1 = arith.constant 0 : i32
    return %c0_i32, %c0_i32_0 : i32, i32
  }
  func.func @transform_5(%arg0: i32) -> (i32, i32) {
    %c0_i32 = arith.constant 0 : i32
    %c0_i32_0 = arith.constant 0 : i32
    return %arg0, %c0_i32 : i32, i32
  }
}

</mosaic_0001>

<llo_original>
// kernel: tpu_custom_call.1
$region0: #{tpu_custom_call.1}
  #allocation0 [shape = 'u32[]', space=smem, size = 0x4, offset = 0x4, fixed_abs, tag = 'smem constant byte address 0x4 - core index']
  #allocation1 [shape = 'u32[144,128]{1,0:T(1,128)}', space=vmem, size = 0x12000, scoped, tag = 'internal scratch']
  %s0 = inlined_call_operand.hbm [shape: f32[8,128], index: 0, kind: input, shape index: {}]
  %s1 = inlined_call_operand.hbm [shape: bf16[128,128], index: 1, kind: input, shape index: {}]
  %s2 = inlined_call_operand.hbm [shape: bf16[128,128], index: 2, kind: input, shape index: {}]
  %s3 = inlined_call_operand.hbm [shape: bf16[128,128], index: 3, kind: input, shape index: {}]
  %s4 = inlined_call_operand.hbm [shape: bf16[128,128], index: 4, kind: input, shape index: {}]
  %s5 = inlined_call_operand.hbm [shape: f32[8,128], index: 5, kind: output, shape index: {}]
  %s6 = sld [smem:[#allocation0]]
  $region50: #{tpu_custom_call.1} parent=0
    _
  %s8 = ssub.s32 1, %s6
  %s9 = scalar_select 0, %s8, %s6
  $region1: #{tpu_custom_call.1} parent=0
    #allocation2 [shape = 'u8[4096]{0}', space=vmem, size = 0x1000, scoped, tag = 'input window, operand 0, single buffered']
    #allocation3 [shape = 's32[1]{0}', space=sflag, size = 0x4, scoped, tag = 'scoped memory for tpu_custom_call.1']
    #allocation4 [shape = 's32[1]{0}', space=sflag, size = 0x4, scoped, tag = 'scoped memory for tpu_custom_call.1']
    #allocation5 [shape = 'u8[32768]{0}', space=vmem, size = 0x8000, scoped, tag = 'input window, operand 1, single buffered']
    #allocation6 [shape = 's32[1]{0}', space=sflag, size = 0x4, scoped, tag = 'scoped memory for tpu_custom_call.1']
    #allocation7 [shape = 'u8[32768]{0}', space=vmem, size = 0x8000, scoped, tag = 'input window, operand 2, single buffered']
    #allocation8 [shape = 'u8[32768]{0}', space=vmem, size = 0x8000, scoped, tag = 'input window, operand 3, single buffered']
    #allocation9 [shape = 's32[1]{0}', space=sflag, size = 0x4, scoped, tag = 'scoped memory for tpu_custom_call.1']
    #allocation10 [shape = 'u8[32768]{0}', space=vmem, size = 0x8000, scoped, tag = 'input window, operand 4, single buffered']
    #allocation11 [shape = 'u8[4096]{0}', space=vmem, size = 0x1000, scoped, tag = 'output window, operand 0, single buffered']
    %10 = vsyncpa [#allocation3], 0
    %11 = vsyncpa [#allocation6], 0
    %12 = vsyncpa [#allocation9], 0
    %13 = vsyncpa [#allocation4], 0
    // Predicated region
    $region2: #{tpu_custom_call.1} parent=1 // pred_check
      _
    $region3: #{tpu_custom_call.1} parent=1 // pred_check_branch
      %15 = sbr.rel (0) target = $region5
    $region4: #{tpu_custom_call.1} parent=1 // pred_region
      %s17 = ssub.s32 128, 128
      %18 = vsyncadd [#allocation3], %s17
      %s20 = sshll.u32 [#allocation2], 4
      %s21 = int_to_ptr.vmem [resolvable:$true] %s20
      %23 = dma.hbm_to_vmem [thread:$0]  %s0, 128, %s21, [#allocation3]
    $region5: #{tpu_custom_call.1} parent=1 // pred_fallthru
      _
    // Predicated region
    $region6: #{tpu_custom_call.1} parent=1 // pred_check
      _
    $region7: #{tpu_custom_call.1} parent=1 // pred_check_branch
      %25 = sbr.rel (0) target = $region9
    $region8: #{tpu_custom_call.1} parent=1 // pred_region
      %s27 = ssub.s32 1024, 1024
      %28 = vsyncadd [#allocation6], %s27
      %s29 = sshll.u32 [#allocation5], 4
      %s30 = int_to_ptr.vmem [resolvable:$true] %s29
      %35 = dma.hbm_to_vmem [thread:$0]  %s1, 1024, %s30, [#allocation6], 64, 64, 4
    $region9: #{tpu_custom_call.1} parent=1 // pred_fallthru
      _
    // Predicated region
    $region10: #{tpu_custom_call.1} parent=1 // pred_check
      _
    $region11: #{tpu_custom_call.1} parent=1 // pred_check_branch
      %37 = sbr.rel (0) target = $region13
    $region12: #{tpu_custom_call.1} parent=1 // pred_region
      %s39 = ssub.s32 1024, 1024
      %40 = vsyncadd [#allocation6], %s39
      %s41 = sshll.u32 [#allocation7], 4
      %s42 = int_to_ptr.vmem [resolvable:$true] %s41
      %47 = dma.hbm_to_vmem [thread:$0]  %s2, 1024, %s42, [#allocation6], 64, 64, 4
    $region13: #{tpu_custom_call.1} parent=1 // pred_fallthru
      _
    // Predicated region
    $region14: #{tpu_custom_call.1} parent=1 // pred_check
      _
    $region15: #{tpu_custom_call.1} parent=1 // pred_check_branch
      %49 = sbr.rel (0) target = $region17
    $region16: #{tpu_custom_call.1} parent=1 // pred_region
      %s51 = ssub.s32 1024, 1024
      %52 = vsyncadd [#allocation9], %s51
      %s53 = sshll.u32 [#allocation8], 4
      %s54 = int_to_ptr.vmem [resolvable:$true] %s53
      %59 = dma.hbm_to_vmem [thread:$0]  %s3, 1024, %s54, [#allocation9], 64, 64, 4
    $region17: #{tpu_custom_call.1} parent=1 // pred_fallthru
      _
    // Predicated region
    $region18: #{tpu_custom_call.1} parent=1 // pred_check
      _
    $region19: #{tpu_custom_call.1} parent=1 // pred_check_branch
      %61 = sbr.rel (0) target = $region21
    $region20: #{tpu_custom_call.1} parent=1 // pred_region
      %s63 = ssub.s32 1024, 1024
      %64 = vsyncadd [#allocation9], %s63
      %s65 = sshll.u32 [#allocation10], 4
      %s66 = int_to_ptr.vmem [resolvable:$true] %s65
      %71 = dma.hbm_to_vmem [thread:$0]  %s4, 1024, %s66, [#allocation9], 64, 64, 4
    $region21: #{tpu_custom_call.1} parent=1 // pred_fallthru
      _
    // Predicated region
    $region22: #{tpu_custom_call.1} parent=1 // pred_check
      _
    $region23: #{tpu_custom_call.1} parent=1 // pred_check_branch
      %73 = sbr.rel (0) target = $region25
    $region24: #{tpu_custom_call.1} parent=1 // pred_region
      %74 = dma.done [#allocation3], 128
    $region25: #{tpu_custom_call.1} parent=1 // pred_fallthru
      _
    // Predicated region
    $region26: #{tpu_custom_call.1} parent=1 // pred_check
      _
    $region27: #{tpu_custom_call.1} parent=1 // pred_check_branch
      %76 = sbr.rel (0) target = $region29
    $region28: #{tpu_custom_call.1} parent=1 // pred_region
      %77 = dma.done [#allocation6], 1024
    $region29: #{tpu_custom_call.1} parent=1 // pred_fallthru
      _
    // Predicated region
    $region30: #{tpu_custom_call.1} parent=1 // pred_check
      _
    $region31: #{tpu_custom_call.1} parent=1 // pred_check_branch
      %79 = sbr.rel (0) target = $region33
    $region32: #{tpu_custom_call.1} parent=1 // pred_region
      %80 = dma.done [#allocation6], 1024
    $region33: #{tpu_custom_call.1} parent=1 // pred_fallthru
      _
    // Predicated region
    $region34: #{tpu_custom_call.1} parent=1 // pred_check
      _
    $region35: #{tpu_custom_call.1} parent=1 // pred_check_branch
      %82 = sbr.rel (0) target = $region37
    $region36: #{tpu_custom_call.1} parent=1 // pred_region
      %83 = dma.done [#allocation9], 1024
    $region37: #{tpu_custom_call.1} parent=1 // pred_fallthru
      _
    // Predicated region
    $region38: #{tpu_custom_call.1} parent=1 // pred_check
      _
    $region39: #{tpu_custom_call.1} parent=1 // pred_check_branch
      %85 = sbr.rel (0) target = $region41
    $region40: #{tpu_custom_call.1} parent=1 // pred_region
      %86 = dma.done [#allocation9], 1024
    $region41: #{tpu_custom_call.1} parent=1 // pred_fallthru
      _
    %v88 = vld [vmem:[#allocation2] sm:$0xff]
    %v89 = vmul.f32 %v88, %v88
    %90 = vadd.xlane.f32.xlu0 %v89
    %v91 = vpop.xlane.xlu0 %90
    %v92 = vmax.f32 %v91, 1e-24
    %v93 = vrsqrt.pop %v92
    %v94 = vmul.f32 %v88, %v93
    %v95 = vld [vmem:[#allocation5] sm:$0xf]
    %v96 = vld [vmem:[#allocation5 + $0x4] sm:$0xf]
    %v97 = vld [vmem:[#allocation5 + $0x8] sm:$0xf]
    %v98 = vld [vmem:[#allocation5 + $0xc] sm:$0xf]
    %v99 = vld [vmem:[#allocation5 + $0x10] sm:$0xf]
    %v100 = vld [vmem:[#allocation5 + $0x14] sm:$0xf]
    %v101 = vld [vmem:[#allocation5 + $0x18] sm:$0xf]
    %v102 = vld [vmem:[#allocation5 + $0x1c] sm:$0xf]
    %v103 = vld [vmem:[#allocation5 + $0x20] sm:$0xf]
    %v104 = vld [vmem:[#allocation5 + $0x24] sm:$0xf]
    %v105 = vld [vmem:[#allocation5 + $0x28] sm:$0xf]
    %v106 = vld [vmem:[#allocation5 + $0x2c] sm:$0xf]
    %v107 = vld [vmem:[#allocation5 + $0x30] sm:$0xf]
    %v108 = vld [vmem:[#allocation5 + $0x34] sm:$0xf]
    %v109 = vld [vmem:[#allocation5 + $0x38] sm:$0xf]
    %v110 = vld [vmem:[#allocation5 + $0x3c] sm:$0xf]
    %v111 = vpack.c.bf16 %v94, %v94
    %v128 = vunpack.c.l.b16 %v95
    %v129 = vunpack.c.l.b16 %v96
    %v130 = vunpack.c.l.b16 %v97
    %v131 = vunpack.c.l.b16 %v98
    %v132 = vunpack.c.l.b16 %v99
    %v133 = vunpack.c.l.b16 %v100
    %v134 = vunpack.c.l.b16 %v101
    %v135 = vunpack.c.l.b16 %v102
    %v136 = vunpack.c.l.b16 %v103
    %v137 = vunpack.c.l.b16 %v104
    %v138 = vunpack.c.l.b16 %v105
    %v139 = vunpack.c.l.b16 %v106
    %v140 = vunpack.c.l.b16 %v107
    %v141 = vunpack.c.l.b16 %v108
    %v142 = vunpack.c.l.b16 %v109
    %v143 = vunpack.c.l.b16 %v110
    %v144 = vpack.c.b16 %v129, %v128
    %v145 = vpack.c.b16 %v131, %v130
    %v146 = vpack.c.b16 %v133, %v132
    %v147 = vpack.c.b16 %v135, %v134
    %v148 = vpack.c.b16 %v137, %v136
    %v149 = vpack.c.b16 %v139, %v138
    %v150 = vpack.c.b16 %v141, %v140
    %v151 = vpack.c.b16 %v143, %v142
    %160 = vmatprep.subr.bf16.mxu0 0
    %161 = vmatpush1.bf16.msra.mxu0 %v144
    %162 = vmatprep.subr.bf16.mxu0 0
    %163 = vmatpush1.bf16.msra.mxu0 %v145
    %164 = vmatprep.subr.bf16.mxu0 0
    %165 = vmatpush1.bf16.msra.mxu0 %v146
    %166 = vmatprep.subr.bf16.mxu0 0
    %167 = vmatpush1.bf16.msra.mxu0 %v147
    %168 = vmatprep.subr.bf16.mxu0 0
    %169 = vmatpush1.bf16.msra.mxu0 %v148
    %170 = vmatprep.subr.bf16.mxu0 0
    %171 = vmatpush1.bf16.msra.mxu0 %v149
    %172 = vmatprep.subr.bf16.mxu0 0
    %173 = vmatpush1.bf16.msra.mxu0 %v150
    %174 = vmatprep.subr.bf16.mxu0 0
    %175 = vmatpush1.bf16.msra.mxu0 %v151
    %176 = vmatprep.subr.bf16.mxu0 0
    %177 = vmatpush1.bf16.msra.mxu0 0
    %178 = vmatprep.subr.bf16.mxu0 0
    %179 = vmatpush1.bf16.msra.mxu0 0
    %180 = vmatprep.subr.bf16.mxu0 0
    %181 = vmatpush1.bf16.msra.mxu0 0
    %182 = vmatprep.subr.bf16.mxu0 0
    %183 = vmatpush1.bf16.msra.mxu0 0
    %184 = vmatprep.subr.bf16.mxu0 0
    %185 = vmatpush1.bf16.msra.mxu0 0
    %186 = vmatprep.subr.bf16.mxu0 0
    %187 = vmatpush1.bf16.msra.mxu0 0
    %188 = vmatprep.subr.bf16.mxu0 0
    %189 = vmatpush1.bf16.msra.mxu0 0
    %190 = vmatprep.subr.bf16.mxu0 0
    %191 = vmatpush1.bf16.msra.mxu0 0
    %192 = vmatprep.mubr.bf16.mxu0 0
    %193 = vmatmul.mubr.bf16.gmra.mrb[0].mxu0 %v111
    %v194 = vpop.f32.mrb[0].mxu0
    %v195 = vadd.f32 0.0, %v194
    %v196 = vpop.f32.mrb[0].mxu0
    %v197 = vpop.f32.mrb[0].mxu0
    %v198 = vpop.f32.mrb[0].mxu0
    %199 = vdwg.mxu0
    %v200 = vmax.f32 %v195, 0.0
    %v201 = vld [vmem:[#allocation7] sm:$0xf]
    %v202 = vld [vmem:[#allocation7 + $0x4] sm:$0xf]
    %v203 = vld [vmem:[#allocation7 + $0x8] sm:$0xf]
    %v204 = vld [vmem:[#allocation7 + $0xc] sm:$0xf]
    %v205 = vld [vmem:[#allocation7 + $0x10] sm:$0xf]
    %v206 = vld [vmem:[#allocation7 + $0x14] sm:$0xf]
    %v207 = vld [vmem:[#allocation7 + $0x18] sm:$0xf]
    %v208 = vld [vmem:[#allocation7 + $0x1c] sm:$0xf]
    %v209 = vld [vmem:[#allocation7 + $0x20] sm:$0xf]
    %v210 = vld [vmem:[#allocation7 + $0x24] sm:$0xf]
    %v211 = vld [vmem:[#allocation7 + $0x28] sm:$0xf]
    %v212 = vld [vmem:[#allocation7 + $0x2c] sm:$0xf]
    %v213 = vld [vmem:[#allocation7 + $0x30] sm:$0xf]
    %v214 = vld [vmem:[#allocation7 + $0x34] sm:$0xf]
    %v215 = vld [vmem:[#allocation7 + $0x38] sm:$0xf]
    %v216 = vld [vmem:[#allocation7 + $0x3c] sm:$0xf]
    %v217 = vpack.c.bf16 %v200, %v200
    %v234 = vunpack.c.l.b16 %v201
    %v235 = vunpack.c.l.b16 %v202
    %v236 = vunpack.c.l.b16 %v203
    %v237 = vunpack.c.l.b16 %v204
    %v238 = vunpack.c.l.b16 %v205
    %v239 = vunpack.c.l.b16 %v206
    %v240 = vunpack.c.l.b16 %v207
    %v241 = vunpack.c.l.b16 %v208
    %v242 = vunpack.c.l.b16 %v209
    %v243 = vunpack.c.l.b16 %v210
    %v244 = vunpack.c.l.b16 %v211
    %v245 = vunpack.c.l.b16 %v212
    %v246 = vunpack.c.l.b16 %v213
    %v247 = vunpack.c.l.b16 %v214
    %v248 = vunpack.c.l.b16 %v215
    %v249 = vunpack.c.l.b16 %v216
    %v250 = vpack.c.b16 %v235, %v234
    %v251 = vpack.c.b16 %v237, %v236
    %v252 = vpack.c.b16 %v239, %v238
    %v253 = vpack.c.b16 %v241, %v240
    %v254 = vpack.c.b16 %v243, %v242
    %v255 = vpack.c.b16 %v245, %v244
    %v256 = vpack.c.b16 %v247, %v246
    %v257 = vpack.c.b16 %v249, %v248
    %266 = vmatprep.subr.bf16.mxu0 0
    %267 = vmatpush1.bf16.msra.mxu0 %v250
    %268 = vmatprep.subr.bf16.mxu0 0
    %269 = vmatpush1.bf16.msra.mxu0 %v251
    %270 = vmatprep.subr.bf16.mxu0 0
    %271 = vmatpush1.bf16.msra.mxu0 %v252
    %272 = vmatprep.subr.bf16.mxu0 0
    %273 = vmatpush1.bf16.msra.mxu0 %v253
    %274 = vmatprep.subr.bf16.mxu0 0
    %275 = vmatpush1.bf16.msra.mxu0 %v254
    %276 = vmatprep.subr.bf16.mxu0 0
    %277 = vmatpush1.bf16.msra.mxu0 %v255
    %278 = vmatprep.subr.bf16.mxu0 0
    %279 = vmatpush1.bf16.msra.mxu0 %v256
    %280 = vmatprep.subr.bf16.mxu0 0
    %281 = vmatpush1.bf16.msra.mxu0 %v257
    %282 = vmatprep.subr.bf16.mxu0 0
    %283 = vmatpush1.bf16.msra.mxu0 0
    %284 = vmatprep.subr.bf16.mxu0 0
    %285 = vmatpush1.bf16.msra.mxu0 0
    %286 = vmatprep.subr.bf16.mxu0 0
    %287 = vmatpush1.bf16.msra.mxu0 0
    %288 = vmatprep.subr.bf16.mxu0 0
    %289 = vmatpush1.bf16.msra.mxu0 0
    %290 = vmatprep.subr.bf16.mxu0 0
    %291 = vmatpush1.bf16.msra.mxu0 0
    %292 = vmatprep.subr.bf16.mxu0 0
    %293 = vmatpush1.bf16.msra.mxu0 0
    %294 = vmatprep.subr.bf16.mxu0 0
    %295 = vmatpush1.bf16.msra.mxu0 0
    %296 = vmatprep.subr.bf16.mxu0 0
    %297 = vmatpush1.bf16.msra.mxu0 0
    %298 = vmatprep.mubr.bf16.mxu0 0
    %299 = vmatmul.mubr.bf16.gmra.mrb[0].mxu0 %v217
    %v300 = vpop.f32.mrb[0].mxu0
    %v301 = vadd.f32 0.0, %v300
    %v302 = vpop.f32.mrb[0].mxu0
    %v303 = vpop.f32.mrb[0].mxu0
    %v304 = vpop.f32.mrb[0].mxu0
    %305 = vdwg.mxu0
    %v306 = vmax.f32 %v301, 0.0
    %v307 = vmul.f32 %v200, 0.5
    %v308 = vadd.f32 %v306, %v307
    %v309 = vld [vmem:[#allocation8] sm:$0xf]
    %v310 = vld [vmem:[#allocation8 + $0x4] sm:$0xf]
    %v311 = vld [vmem:[#allocation8 + $0x8] sm:$0xf]
    %v312 = vld [vmem:[#allocation8 + $0xc] sm:$0xf]
    %v313 = vld [vmem:[#allocation8 + $0x10] sm:$0xf]
    %v314 = vld [vmem:[#allocation8 + $0x14] sm:$0xf]
    %v315 = vld [vmem:[#allocation8 + $0x18] sm:$0xf]
    %v316 = vld [vmem:[#allocation8 + $0x1c] sm:$0xf]
    %v317 = vld [vmem:[#allocation8 + $0x20] sm:$0xf]
    %v318 = vld [vmem:[#allocation8 + $0x24] sm:$0xf]
    %v319 = vld [vmem:[#allocation8 + $0x28] sm:$0xf]
    %v320 = vld [vmem:[#allocation8 + $0x2c] sm:$0xf]
    %v321 = vld [vmem:[#allocation8 + $0x30] sm:$0xf]
    %v322 = vld [vmem:[#allocation8 + $0x34] sm:$0xf]
    %v323 = vld [vmem:[#allocation8 + $0x38] sm:$0xf]
    %v324 = vld [vmem:[#allocation8 + $0x3c] sm:$0xf]
    %v325 = vpack.c.bf16 %v308, %v308
    %v342 = vunpack.c.l.b16 %v309
    %v343 = vunpack.c.l.b16 %v310
    %v344 = vunpack.c.l.b16 %v311
    %v345 = vunpack.c.l.b16 %v312
    %v346 = vunpack.c.l.b16 %v313
    %v347 = vunpack.c.l.b16 %v314
    %v348 = vunpack.c.l.b16 %v315
    %v349 = vunpack.c.l.b16 %v316
    %v350 = vunpack.c.l.b16 %v317
    %v351 = vunpack.c.l.b16 %v318
    %v352 = vunpack.c.l.b16 %v319
    %v353 = vunpack.c.l.b16 %v320
    %v354 = vunpack.c.l.b16 %v321
    %v355 = vunpack.c.l.b16 %v322
    %v356 = vunpack.c.l.b16 %v323
    %v357 = vunpack.c.l.b16 %v324
    %v358 = vpack.c.b16 %v343, %v342
    %v359 = vpack.c.b16 %v345, %v344
    %v360 = vpack.c.b16 %v347, %v346
    %v361 = vpack.c.b16 %v349, %v348
    %v362 = vpack.c.b16 %v351, %v350
    %v363 = vpack.c.b16 %v353, %v352
    %v364 = vpack.c.b16 %v355, %v354
    %v365 = vpack.c.b16 %v357, %v356
    %374 = vmatprep.subr.bf16.mxu0 0
    %375 = vmatpush1.bf16.msra.mxu0 %v358
    %376 = vmatprep.subr.bf16.mxu0 0
    %377 = vmatpush1.bf16.msra.mxu0 %v359
    %378 = vmatprep.subr.bf16.mxu0 0
    %379 = vmatpush1.bf16.msra.mxu0 %v360
    %380 = vmatprep.subr.bf16.mxu0 0
    %381 = vmatpush1.bf16.msra.mxu0 %v361
    %382 = vmatprep.subr.bf16.mxu0 0
    %383 = vmatpush1.bf16.msra.mxu0 %v362
    %384 = vmatprep.subr.bf16.mxu0 0
    %385 = vmatpush1.bf16.msra.mxu0 %v363
    %386 = vmatprep.subr.bf16.mxu0 0
    %387 = vmatpush1.bf16.msra.mxu0 %v364
    %388 = vmatprep.subr.bf16.mxu0 0
    %389 = vmatpush1.bf16.msra.mxu0 %v365
    %390 = vmatprep.subr.bf16.mxu0 0
    %391 = vmatpush1.bf16.msra.mxu0 0
    %392 = vmatprep.subr.bf16.mxu0 0
    %393 = vmatpush1.bf16.msra.mxu0 0
    %394 = vmatprep.subr.bf16.mxu0 0
    %395 = vmatpush1.bf16.msra.mxu0 0
    %396 = vmatprep.subr.bf16.mxu0 0
    %397 = vmatpush1.bf16.msra.mxu0 0
    %398 = vmatprep.subr.bf16.mxu0 0
    %399 = vmatpush1.bf16.msra.mxu0 0
    %400 = vmatprep.subr.bf16.mxu0 0
    %401 = vmatpush1.bf16.msra.mxu0 0
    %402 = vmatprep.subr.bf16.mxu0 0
    %403 = vmatpush1.bf16.msra.mxu0 0
    %404 = vmatprep.subr.bf16.mxu0 0
    %405 = vmatpush1.bf16.msra.mxu0 0
    %406 = vmatprep.mubr.bf16.mxu0 0
    %407 = vmatmul.mubr.bf16.gmra.mrb[0].mxu0 %v325
    %v408 = vpop.f32.mrb[0].mxu0
    %v409 = vadd.f32 0.0, %v408
    %v410 = vpop.f32.mrb[0].mxu0
    %v411 = vpop.f32.mrb[0].mxu0
    %v412 = vpop.f32.mrb[0].mxu0
    %413 = vdwg.mxu0
    %v414 = vmax.f32 %v409, 0.0
    %v415 = vmul.f32 %v308, 0.5
    %v416 = vadd.f32 %v414, %v415
    %v417 = vld [vmem:[#allocation10] sm:$0xf]
    %v418 = vld [vmem:[#allocation10 + $0x4] sm:$0xf]
    %v419 = vld [vmem:[#allocation10 + $0x8] sm:$0xf]
    %v420 = vld [vmem:[#allocation10 + $0xc] sm:$0xf]
    %v421 = vld [vmem:[#allocation10 + $0x10] sm:$0xf]
    %v422 = vld [vmem:[#allocation10 + $0x14] sm:$0xf]
    %v423 = vld [vmem:[#allocation10 + $0x18] sm:$0xf]
    %v424 = vld [vmem:[#allocation10 + $0x1c] sm:$0xf]
    %v425 = vld [vmem:[#allocation10 + $0x20] sm:$0xf]
    %v426 = vld [vmem:[#allocation10 + $0x24] sm:$0xf]
    %v427 = vld [vmem:[#allocation10 + $0x28] sm:$0xf]
    %v428 = vld [vmem:[#allocation10 + $0x2c] sm:$0xf]
    %v429 = vld [vmem:[#allocation10 + $0x30] sm:$0xf]
    %v430 = vld [vmem:[#allocation10 + $0x34] sm:$0xf]
    %v431 = vld [vmem:[#allocation10 + $0x38] sm:$0xf]
    %v432 = vld [vmem:[#allocation10 + $0x3c] sm:$0xf]
    %v433 = vpack.c.bf16 %v416, %v416
    %v450 = vunpack.c.l.b16 %v417
    %v451 = vunpack.c.l.b16 %v418
    %v452 = vunpack.c.l.b16 %v419
    %v453 = vunpack.c.l.b16 %v420
    %v454 = vunpack.c.l.b16 %v421
    %v455 = vunpack.c.l.b16 %v422
    %v456 = vunpack.c.l.b16 %v423
    %v457 = vunpack.c.l.b16 %v424
    %v458 = vunpack.c.l.b16 %v425
    %v459 = vunpack.c.l.b16 %v426
    %v460 = vunpack.c.l.b16 %v427
    %v461 = vunpack.c.l.b16 %v428
    %v462 = vunpack.c.l.b16 %v429
    %v463 = vunpack.c.l.b16 %v430
    %v464 = vunpack.c.l.b16 %v431
    %v465 = vunpack.c.l.b16 %v432
    %v466 = vpack.c.b16 %v451, %v450
    %v467 = vpack.c.b16 %v453, %v452
    %v468 = vpack.c.b16 %v455, %v454
    %v469 = vpack.c.b16 %v457, %v456
    %v470 = vpack.c.b16 %v459, %v458
    %v471 = vpack.c.b16 %v461, %v460
    %v472 = vpack.c.b16 %v463, %v462
    %v473 = vpack.c.b16 %v465, %v464
    %482 = vmatprep.subr.bf16.mxu0 0
    %483 = vmatpush1.bf16.msra.mxu0 %v466
    %484 = vmatprep.subr.bf16.mxu0 0
    %485 = vmatpush1.bf16.msra.mxu0 %v467
    %486 = vmatprep.subr.bf16.mxu0 0
    %487 = vmatpush1.bf16.msra.mxu0 %v468
    %488 = vmatprep.subr.bf16.mxu0 0
    %489 = vmatpush1.bf16.msra.mxu0 %v469
    %490 = vmatprep.subr.bf16.mxu0 0
    %491 = vmatpush1.bf16.msra.mxu0 %v470
    %492 = vmatprep.subr.bf16.mxu0 0
    %493 = vmatpush1.bf16.msra.mxu0 %v471
    %494 = vmatprep.subr.bf16.mxu0 0
    %495 = vmatpush1.bf16.msra.mxu0 %v472
    %496 = vmatprep.subr.bf16.mxu0 0
    %497 = vmatpush1.bf16.msra.mxu0 %v473
    %498 = vmatprep.subr.bf16.mxu0 0
    %499 = vmatpush1.bf16.msra.mxu0 0
    %500 = vmatprep.subr.bf16.mxu0 0
    %501 = vmatpush1.bf16.msra.mxu0 0
    %502 = vmatprep.subr.bf16.mxu0 0
    %503 = vmatpush1.bf16.msra.mxu0 0
    %504 = vmatprep.subr.bf16.mxu0 0
    %505 = vmatpush1.bf16.msra.mxu0 0
    %506 = vmatprep.subr.bf16.mxu0 0
    %507 = vmatpush1.bf16.msra.mxu0 0
    %508 = vmatprep.subr.bf16.mxu0 0
    %509 = vmatpush1.bf16.msra.mxu0 0
    %510 = vmatprep.subr.bf16.mxu0 0
    %511 = vmatpush1.bf16.msra.mxu0 0
    %512 = vmatprep.subr.bf16.mxu0 0
    %513 = vmatpush1.bf16.msra.mxu0 0
    %514 = vmatprep.mubr.bf16.mxu0 0
    %515 = vmatmul.mubr.bf16.gmra.mrb[0].mxu0 %v433
    %v516 = vpop.f32.mrb[0].mxu0
    %v517 = vadd.f32 0.0, %v516
    %v518 = vpop.f32.mrb[0].mxu0
    %v519 = vpop.f32.mrb[0].mxu0
    %v520 = vpop.f32.mrb[0].mxu0
    %521 = vdwg.mxu0
    %v522 = vmax.f32 %v517, 0.0
    %523 = vst [vmem:[#allocation11] sm:$0xff] %v522
    // Predicated region
    $region42: #{tpu_custom_call.1} parent=1 // pred_check
      _
    $region43: #{tpu_custom_call.1} parent=1 // pred_check_branch
      %525 = sbr.rel (0) target = $region45
    $region44: #{tpu_custom_call.1} parent=1 // pred_region
      %s527 = ssub.s32 128, 128
      %528 = vsyncadd [#allocation4], %s527
      %s530 = sshll.u32 [#allocation11], 4
      %s531 = int_to_ptr.vmem [resolvable:$true] %s530
      %533 = dma.vmem_to_hbm [thread:$0]  %s531, 128, %s5, [#allocation4]
    $region45: #{tpu_custom_call.1} parent=1 // pred_fallthru
      _
    // Predicated region
    $region46: #{tpu_custom_call.1} parent=1 // pred_check
      _
    $region47: #{tpu_custom_call.1} parent=1 // pred_check_branch
      %535 = sbr.rel (0) target = $region49
    $region48: #{tpu_custom_call.1} parent=1 // pred_region
      %536 = dma.done [#allocation4], 128
    $region49: #{tpu_custom_call.1} parent=1 // pred_fallthru
      _
    %537 = vsyncpa [#allocation3], 1
    %538 = vsyncpa [#allocation6], 1
    %539 = vsyncpa [#allocation9], 1
    %540 = vsyncpa [#allocation4], 1

</llo_original>
